<compile_context>
chip_gen: v6e
topology: v6e:2x2x1
jax: 0.10.0
libtpu: 0.0.40
codegen_flags: <defaults>
</compile_context>

<pallas_src>
import math
import functools

import jax
import jax.numpy as jnp
from jax.experimental import pallas as pl
from jax.experimental.pallas import tpu as pltpu


def _attention1d_kernel(x_ref, w1_ref, w2_ref, b_ref, temp_ref, o_ref, acc_ref,
                        *, lane_slices):
    """grid = (B tiles, L tiles); the L (reduction) axis is last and 'arbitrary'."""
    l = pl.program_id(1)

    # ---- init: zero the pooled-sum accumulator at the first L tile ----
    @pl.when(l == 0)
    def _():
        acc_ref[...] = jnp.zeros_like(acc_ref)

    # ---- hot loop: partial sum of this x tile over L (hidden under the x DMA) ----
    if lane_slices:
        # Lane-dense VPU-only accumulation: add the lt/128 static 128-wide lane slices;
        # the single cross-lane reduce is deferred to the finalize branch.
        part = x_ref[:, :, pl.ds(0, 128)].astype(jnp.float32)
        for i in range(1, lane_slices):
            part = part + x_ref[:, :, pl.ds(i * 128, 128)].astype(jnp.float32)
        acc_ref[...] += part                                          # (bt, C, 128)
    else:
        # lt is not a multiple of 128 (short / odd L, always a single L step):
        # fall back to a plain cross-lane reduce.
        acc_ref[...] += jnp.sum(x_ref[...].astype(jnp.float32), axis=-1)   # (bt, C)

    # ---- finalize (once per B tile): tiny matmuls + bias + softmax (off hot path) ----
    @pl.when(l == pl.num_programs(1) - 1)
    def _():
        if lane_slices:
            pooled = jnp.sum(acc_ref[...], axis=-1)     # one 128->1 XLU reduce, (bt, C)
        else:
            pooled = acc_ref[...]                       # (bt, C)
        # NOTE: 1/L is folded into w1 by the wrapper, so `pooled` is the raw L-sum.
        h = jnp.dot(pooled, w1_ref[...], preferred_element_type=jnp.float32)   # (bt, H)
        h = jnp.maximum(h, 0.0)                                                # relu
        logits = jnp.dot(h, w2_ref[...], preferred_element_type=jnp.float32)   # (bt, K)
        logits = (logits + b_ref[...]) * (1.0 / temp_ref[0, 0])                # bias, /T
        m = jnp.max(logits, axis=-1, keepdims=True)
        e = jnp.exp(logits - m)
        denom = jnp.sum(e, axis=-1, keepdims=True)
        o_ref[...] = (e * pl.reciprocal(denom, approx=True)).astype(o_ref.dtype)


def _vmem_budgets():
    """Query the chip's VMEM instead of hard-coding; return (physical, scoped_limit)."""
    cap = None
    try:
        cap = int(getattr(pltpu.get_tpu_info(), "vmem_capacity_bytes", 0)) or None
    except Exception:
        cap = None
    if cap is None:
        cap = 64 << 20          # conservative fallback: smallest (v7x-sized) VMEM
    # Leave ~16 MiB compiler headroom, clamp to [32 MiB, 64 MiB]:
    #   v7x  (64 MiB physical)      -> 48 MiB scoped limit
    #   v5e / v6e (128 MiB physical) -> 64 MiB scoped limit
    limit = int(min(max(cap - (16 << 20), 32 << 20), 64 << 20))
    return cap, limit


def _choose_tiles(B, C, L, itemsize, pair_budget):
    """Pick (bt, lt) for the streamed x block (bt, C, lt).

    Legality: the (bt, K) output block requires bt to be a multiple of 8 or equal B;
    lt must be a multiple of 128 or equal L.  Within that, take the fewest grid steps
    (fattest tiles) whose double-buffered pair fits `pair_budget`.
    """
    tile_budget = max(pair_budget // 2, 1)

    b_cands = sorted({d for d in range(1, B + 1) if B % d == 0 and d % 8 == 0} | {B})
    l_cands = sorted({c for c in (8192, 4096, 2048, 1024, 512, 256, 128)
                      if c < L and L % c == 0} | {L})

    best = None
    for lt in l_cands:
        for bt in b_cands:
            nbytes = bt * C * lt * itemsize
            if nbytes > tile_budget:
                continue
            steps = (B // bt) * (L // lt)
            # fewest total steps; prefer splitting B (parallel) over L (reduction);
            # then prefer the bigger tile.
            score = (-steps, -(L // lt), nbytes)
            if best is None or score > best[0]:
                best = (score, bt, lt)

    if best is None:
        # Even the smallest legal block exceeds the budget (e.g. huge C with an odd L);
        # take it anyway — the caller raises vmem_limit_bytes to cover it.
        return min(b_cands), min(l_cands)
    _, bt, lt = best

    # Megacore friendliness (v7x has 2 TensorCores): if B collapsed to a single tile
    # but an even split keeps each step's DMA >= ~1 MiB, prefer the split
    # (free on single-core chips, ~parallel speedup on v7x).
    if B // bt == 1:
        for nb in (2, 4):
            if B % nb == 0:
                cand = B // nb
                if cand in b_cands and cand * C * lt * itemsize >= (1 << 20):
                    bt = cand
                    break
    return bt, lt


def attention1d_forward(x, w1, w2, b2, temperature, *, pair_budget_bytes=None):
    """x: (B, C, L); w1: (H, C, 1); w2: (K, H, 1); b2: (K,). Returns (B, K) f32."""
    B, C, L = x.shape
    H = w1.shape[0]
    K = w2.shape[0]

    # 1x1 conv weights -> plain matmul operands.  Fold the 1/L pooling mean into fc1's
    # weight so the kernel accumulates raw sums and no per-L constant is baked in.
    w1_t = (jnp.transpose(w1[:, :, 0], (1, 0)) * (1.0 / float(L))).astype(jnp.float32)  # (C, H)
    w2_t = jnp.transpose(w2[:, :, 0], (1, 0)).astype(jnp.float32)                       # (H, K)
    b_row = b2.reshape(1, K).astype(jnp.float32)                                        # (1, K)
    temp = jnp.asarray(temperature, dtype=jnp.float32).reshape(1, 1)   # runtime SMEM scalar

    itemsize = jnp.dtype(x.dtype).itemsize
    cap, vmem_limit = _vmem_budgets()
    pair_budget = (pair_budget_bytes if pair_budget_bytes is not None
                   else min(vmem_limit // 2, 32 << 20))      # both pipelined x buffers
    bt, lt = _choose_tiles(B, C, L, itemsize, pair_budget)
    tile_bytes = bt * C * lt * itemsize
    # Guard the fallback path: if the minimal legal block was forced over budget,
    # raise the scoped limit to cover the double-buffered pair (capped at physical).
    vmem_limit = int(min(max(vmem_limit, 2 * tile_bytes + (2 << 20)), cap))
    # TODO(synk): if 2*tile_bytes still exceeds physical VMEM (huge C with an odd L), a
    # pl.cdiv grid with in-kernel masking would be needed; not implemented.

    lane_slices = (lt // 128) if (lt % 128 == 0) else 0
    acc_shape = (bt, C, 128) if lane_slices else (bt, C)
    grid = (B // bt, L // lt)

    kernel = functools.partial(_attention1d_kernel, lane_slices=lane_slices)

    flops = B * C * L + 2 * B * C * H + 2 * B * H * K          # pooling adds + 2 matmuls
    bytes_accessed = B * C * L * itemsize + (C * H + H * K + K + 1) * 4 + B * K * 4

    return pl.pallas_call(
        kernel,
        out_shape=jax.ShapeDtypeStruct((B, K), jnp.float32),
        grid_spec=pltpu.PrefetchScalarGridSpec(
            num_scalar_prefetch=0,
            grid=grid,
            in_specs=[
                # streamed x tiles (the only large operand; auto double-buffered)
                pl.BlockSpec((bt, C, lt), lambda b, l: (b, 0, l)),
                # tiny weights / bias: full-shape blocks, constant index map -> resident
                pl.BlockSpec((C, H), lambda b, l: (0, 0)),
                pl.BlockSpec((H, K), lambda b, l: (0, 0)),
                pl.BlockSpec((1, K), lambda b, l: (0, 0)),
                # temperature scalar in SMEM (no recompile per temperature value)
                pl.BlockSpec(memory_space=pltpu.MemorySpace.SMEM),
            ],
            out_specs=pl.BlockSpec((bt, K), lambda b, l: (b, 0)),
            scratch_shapes=[pltpu.VMEM(acc_shape, jnp.float32)],
        ),
        compiler_params=pltpu.CompilerParams(
            dimension_semantics=("parallel", "arbitrary"),
            vmem_limit_bytes=vmem_limit,
        ),
        cost_estimate=pl.CostEstimate(
            flops=flops, transcendentals=B * K, bytes_accessed=bytes_accessed),
    )(x, w1_t, w2_t, b_row, temp)


def _reference(x, w1, w2, b2, temperature):
    pooled = jnp.mean(x.astype(jnp.float32), axis=-1)     # (B, C)
    h = jax.nn.relu(pooled @ w1[:, :, 0].T)               # (B, H)
    logits = h @ w2[:, :, 0].T + b2[None, :]              # (B, K)
    return jax.nn.softmax(logits / temperature, axis=1)


def _run_case(key, B, C, L, H, K, temperature, **kw):
    kx, k1, k2 = jax.random.split(key, 3)
    x = jax.random.normal(kx, (B, C, L), dtype=jnp.float32)
    # Kaiming normal, mode='fan_out' for Conv1d (out, in, 1): std = sqrt(2 / out).
    w1 = math.sqrt(2.0 / H) * jax.random.normal(k1, (H, C, 1), dtype=jnp.float32)
    w2 = math.sqrt(2.0 / K) * jax.random.normal(k2, (K, H, 1), dtype=jnp.float32)
    b2 = jnp.zeros((K,), dtype=jnp.float32)               # nn.init.constant_(bias, 0)

    out = jax.block_until_ready(attention1d_forward(x, w1, w2, b2, temperature, **kw))
    ref = _reference(x, w1, w2, b2, temperature)
    assert out.shape == (B, K)
    assert jnp.allclose(out, ref, atol=2e-3, rtol=2e-3), "mismatch vs reference"
    assert jnp.allclose(jnp.sum(out, axis=1), 1.0, atol=5e-3), "softmax rows must sum to 1"
    return out


if __name__ == "__main__":
    key = jax.random.PRNGKey(0)
    k_a, k_b, k_c = jax.random.split(key, 3)

    # attention1d(in_planes=16, ratios=0.25, K=4, temperature=4): hidden = int(16*0.25)+1 = 5
    # (temperature % 3 == 1 as asserted by the module).
    in_planes, K, temperature = 16, 4, 4
    hidden = int(in_planes * 0.25) + 1 if in_planes != 3 else K   # = 5

    # Case 1: tiny, single block, non-128-aligned L -> cross-lane-reduce fallback path.
    _run_case(k_a, B=2, C=in_planes, L=16, H=hidden, K=K, temperature=temperature)

    # Case 2: whole x fits one block -> grid (1, 1), lane-dense VPU accumulation.
    _run_case(k_b, B=24, C=in_planes, L=384, H=hidden, K=K, temperature=temperature)

    # Case 3: force a small x-pair budget to exercise the (B tiles, L tiles)
    # accumulation grid (init / accumulate / finalize across L steps) at small shapes.
    _run_case(k_c, B=16, C=in_planes, L=512, H=hidden, K=K, temperature=temperature,
              pair_budget_bytes=128 * 1024)

    print("KERNEL_OK")
</pallas_src>

<mosaic_0001>
module attributes {stable_mosaic.version = 11 : i64} {
  func.func @_attention1d_kernel(%arg0: i32, %arg1: i32, %arg2: memref<2x16x16xf32, #tpu.memory_space<vmem>>, %arg3: memref<16x5xf32, #tpu.memory_space<vmem>>, %arg4: memref<5x4xf32, #tpu.memory_space<vmem>>, %arg5: memref<1x4xf32, #tpu.memory_space<vmem>>, %arg6: memref<1x1xf32, #tpu.memory_space<smem>>, %arg7: memref<2x4xf32, #tpu.memory_space<vmem>>, %arg8: memref<2x16xf32, #tpu.memory_space<vmem>>) attributes {dimension_semantics = [#tpu.dimension_semantics<parallel>, #tpu.dimension_semantics<arbitrary>], iteration_bounds = array<i64: 1, 1>, scalar_prefetch = 0 : i64, scratch_operands = 1 : i64, tpu.core_type = #tpu.core_type<tc>, window_params = [{transform_indices = @transform_0, window_bounds = array<i64: 2, 16, 16>}, {pipeline_mode = #tpu.pipeline_mode<synchronous>, transform_indices = @transform_1, window_bounds = array<i64: 16, 5>}, {pipeline_mode = #tpu.pipeline_mode<synchronous>, transform_indices = @transform_2, window_bounds = array<i64: 5, 4>}, {pipeline_mode = #tpu.pipeline_mode<synchronous>, transform_indices = @transform_3, window_bounds = array<i64: 1, 4>}, {transform_indices = @transform_4, window_bounds = array<i64: 1, 1>}, {transform_indices = @transform_5, window_bounds = array<i64: 2, 4>}]} {
    %c0_i32 = arith.constant 0 : i32
    %0 = arith.cmpi eq, %arg1, %c0_i32 : i32
    %1 = arith.extui %0 : i1 to i32
    %c0_i32_0 = arith.constant 0 : i32
    %2 = arith.cmpi ne, %1, %c0_i32_0 : i32
    scf.if %2 {
      %cst_9 = arith.constant 0.000000e+00 : f32
      %11 = vector.broadcast %cst_9 : f32 to vector<2x16xf32>
      %c0_10 = arith.constant 0 : index
      %c0_11 = arith.constant 0 : index
      %12 = vector.load %arg8[%c0_10, %c0_11] : memref<2x16xf32, #tpu.memory_space<vmem>>, vector<2x16xf32>
      tpu.vector_store %arg8[%c0_10, %c0_11], %11 {strides = array<i32>} : memref<2x16xf32, #tpu.memory_space<vmem>>, vector<2x16xf32>,
    } else {
    }
    %c0 = arith.constant 0 : index
    %c0_1 = arith.constant 0 : index
    %3 = vector.load %arg8[%c0, %c0_1] : memref<2x16xf32, #tpu.memory_space<vmem>>, vector<2x16xf32>
    %c0_2 = arith.constant 0 : index
    %c0_3 = arith.constant 0 : index
    %c0_4 = arith.constant 0 : index
    %4 = vector.load %arg2[%c0_2, %c0_3, %c0_4] : memref<2x16x16xf32, #tpu.memory_space<vmem>>, vector<2x16x16xf32>
    %cst = arith.constant dense<0.000000e+00> : vector<2x16xf32>
    %5 = vector.multi_reduction <add>, %4, %cst [2] : vector<2x16x16xf32> to vector<2x16xf32>
    %6 = arith.addf %3, %5 : vector<2x16xf32>
    %c0_5 = arith.constant 0 : index
    %c0_6 = arith.constant 0 : index
    %7 = vector.load %arg8[%c0_5, %c0_6] : memref<2x16xf32, #tpu.memory_space<vmem>>, vector<2x16xf32>
    tpu.vector_store %arg8[%c0_5, %c0_6], %6 {strides = array<i32>} : memref<2x16xf32, #tpu.memory_space<vmem>>, vector<2x16xf32>,
    %c0_i32_7 = arith.constant 0 : i32
    %8 = arith.cmpi eq, %arg1, %c0_i32_7 : i32
    %9 = arith.extui %8 : i1 to i32
    %c0_i32_8 = arith.constant 0 : i32
    %10 = arith.cmpi ne, %9, %c0_i32_8 : i32
    scf.if %10 {
      %c0_9 = arith.constant 0 : index
      %c0_10 = arith.constant 0 : index
      %11 = vector.load %arg8[%c0_9, %c0_10] : memref<2x16xf32, #tpu.memory_space<vmem>>, vector<2x16xf32>
      %c0_11 = arith.constant 0 : index
      %c0_12 = arith.constant 0 : index
      %12 = vector.load %arg3[%c0_11, %c0_12] : memref<16x5xf32, #tpu.memory_space<vmem>>, vector<16x5xf32>
      %cst_13 = arith.constant dense<0.000000e+00> : vector<2x5xf32>
      %13 = tpu.matmul %11, %12, %cst_13 {dimension_numbers = #tpu.dot_dimension_numbers<[1], [0], [0], [1], [0, 0, 1, 1], [], []>} : vector<2x16xf32>, vector<16x5xf32>, vector<2x5xf32> -> vector<2x5xf32>
      %cst_14 = arith.constant 0.000000e+00 : f32
      %14 = vector.broadcast %cst_14 : f32 to vector<2x5xf32>
      %15 = arith.maximumf %13, %14 : vector<2x5xf32>
      %c0_15 = arith.constant 0 : index
      %c0_16 = arith.constant 0 : index
      %16 = vector.load %arg4[%c0_15, %c0_16] : memref<5x4xf32, #tpu.memory_space<vmem>>, vector<5x4xf32>
      %cst_17 = arith.constant dense<0.000000e+00> : vector<2x4xf32>
      %17 = tpu.matmul %15, %16, %cst_17 {dimension_numbers = #tpu.dot_dimension_numbers<[1], [0], [0], [1], [0, 0, 1, 1], [], []>} : vector<2x5xf32>, vector<5x4xf32>, vector<2x4xf32> -> vector<2x4xf32>
      %c0_18 = arith.constant 0 : index
      %c0_19 = arith.constant 0 : index
      %18 = vector.load %arg5[%c0_18, %c0_19] : memref<1x4xf32, #tpu.memory_space<vmem>>, vector<1x4xf32>
      %19 = vector.broadcast %18 : vector<1x4xf32> to vector<2x4xf32>
      %20 = arith.addf %17, %19 : vector<2x4xf32>
      %c0_20 = arith.constant 0 : index
      %c0_21 = arith.constant 0 : index
      %21 = memref.load %arg6[%c0_20, %c0_21] : memref<1x1xf32, #tpu.memory_space<smem>>
      %cst_22 = arith.constant 1.000000e+00 : f32
      %22 = arith.divf %cst_22, %21 : f32
      %23 = vector.broadcast %22 : f32 to vector<2x4xf32>
      %24 = arith.mulf %20, %23 : vector<2x4xf32>
      %cst_23 = arith.constant dense<0xFF800000> : vector<2xf32>
      %25 = vector.multi_reduction <maximumf>, %24, %cst_23 [1] : vector<2x4xf32> to vector<2xf32>
      %26 = vector.shape_cast %25 : vector<2xf32> to vector<2x1xf32>
      %27 = vector.broadcast %26 : vector<2x1xf32> to vector<2x4xf32>
      %28 = arith.subf %24, %27 : vector<2x4xf32>
      %29 = math.exp %28 : vector<2x4xf32>
      %cst_24 = arith.constant dense<0.000000e+00> : vector<2xf32>
      %30 = vector.multi_reduction <add>, %29, %cst_24 [1] : vector<2x4xf32> to vector<2xf32>
      %31 = vector.shape_cast %30 : vector<2xf32> to vector<2x1xf32>
      %32 = tpu.reciprocal %31 {approx = true} : vector<2x1xf32> -> vector<2x1xf32>
      %33 = vector.broadcast %32 : vector<2x1xf32> to vector<2x4xf32>
      %34 = arith.mulf %29, %33 : vector<2x4xf32>
      %c0_25 = arith.constant 0 : index
      %c0_26 = arith.constant 0 : index
      %35 = vector.load %arg7[%c0_25, %c0_26] : memref<2x4xf32, #tpu.memory_space<vmem>>, vector<2x4xf32>
      tpu.vector_store %arg7[%c0_25, %c0_26], %34 {strides = array<i32>} : memref<2x4xf32, #tpu.memory_space<vmem>>, vector<2x4xf32>,
    } else {
    }
    return
  }
  func.func @transform_0(%arg0: i32, %arg1: i32) -> (i32, i32, i32) {
    %c0_i32 = arith.constant 0 : i32
    %c0_i32_0 = arith.constant 0 : i32
    return %arg0, %c0_i32, %arg1 : i32, i32, i32
  }
  func.func @transform_1(%arg0: i32, %arg1: i32) -> (i32, i32) {
    %c0_i32 = arith.constant 0 : i32
    %c0_i32_0 = arith.constant 0 : i32
    %c0_i32_1 = arith.constant 0 : i32
    return %c0_i32, %c0_i32_0 : i32, i32
  }
  func.func @transform_2(%arg0: i32, %arg1: i32) -> (i32, i32) {
    %c0_i32 = arith.constant 0 : i32
    %c0_i32_0 = arith.constant 0 : i32
    %c0_i32_1 = arith.constant 0 : i32
    return %c0_i32, %c0_i32_0 : i32, i32
  }
  func.func @transform_3(%arg0: i32, %arg1: i32) -> (i32, i32) {
    %c0_i32 = arith.constant 0 : i32
    %c0_i32_0 = arith.constant 0 : i32
    %c0_i32_1 = arith.constant 0 : i32
    return %c0_i32, %c0_i32_0 : i32, i32
  }
  func.func @transform_4(%arg0: i32, %arg1: i32) -> (i32, i32) {
    %c0_i32 = arith.constant 0 : i32
    %c0_i32_0 = arith.constant 0 : i32
    %c0_i32_1 = arith.constant 0 : i32
    return %c0_i32, %c0_i32_0 : i32, i32
  }
  func.func @transform_5(%arg0: i32, %arg1: i32) -> (i32, i32) {
    %c0_i32 = arith.constant 0 : i32
    %c0_i32_0 = arith.constant 0 : i32
    return %arg0, %c0_i32 : i32, i32
  }
}

</mosaic_0001>

<llo_original>
// kernel: tpu_custom_call.1
$region0: #{tpu_custom_call.1}
  #allocation0 [shape = 'u32[]', space=smem, size = 0x4, offset = 0x4, fixed_abs, tag = 'smem constant byte address 0x4 - core index']
  #allocation1 [shape = 'u32[144,128]{1,0:T(1,128)}', space=vmem, size = 0x12000, scoped, tag = 'internal scratch']
  #allocation2 [shape = 'f32[2,16]{1,0:T(2,128)}', space=vmem, size = 0x400, scoped, tag = 'scratch operand']
  #allocation3 [shape = 'f32[1,1]{1,0:T(1,128)S(6)}', space=smem, size = 0x200, scoped, tag = 'scoped memory for tpu_custom_call.1']
  %s0 = inlined_call_operand.vmem [shape: f32[2,16,16], index: 0, kind: input, shape index: {}]
  %s1 = inlined_call_operand.vmem [shape: f32[16,5], index: 1, kind: input, shape index: {}]
  %s2 = inlined_call_operand.vmem [shape: f32[5,4], index: 2, kind: input, shape index: {}]
  %s3 = inlined_call_operand.vmem [shape: f32[1,4], index: 3, kind: input, shape index: {}]
  %s4 = inlined_call_operand.<no memory space> [shape: f32[1,1], index: 4, kind: input, shape index: {}]
  %s5 = inlined_call_operand.hbm [shape: f32[2,4], index: 5, kind: output, shape index: {}]
  %s6 = sld [smem:[#allocation0]]
  $region38: #{tpu_custom_call.1} parent=0
    _
  %s8 = ssub.s32 1, %s6
  %s9 = scalar_select 0, %s8, %s6
  %10 = sst [smem:[#allocation3]] %s4
  $region1: #{tpu_custom_call.1} parent=0
    #allocation4 [shape = 'u8[1024]{0}', space=vmem, size = 0x400, scoped, tag = 'output window, operand 0, single buffered']
    #allocation5 [shape = 's32[1]{0}', space=sflag, size = 0x4, scoped, tag = 'scoped memory for tpu_custom_call.1']
    %11 = vsyncpa [#allocation5], 0
    // Predicated region
    $region2: #{tpu_custom_call.1} parent=1 // pred_check
      _
    $region3: #{tpu_custom_call.1} parent=1 // pred_check_branch
      %13 = sbr.rel (0) target = $region5
    $region4: #{tpu_custom_call.1} parent=1 // pred_region
      _
    $region5: #{tpu_custom_call.1} parent=1 // pred_fallthru
      _
    // Predicated region
    $region6: #{tpu_custom_call.1} parent=1 // pred_check
      _
    $region7: #{tpu_custom_call.1} parent=1 // pred_check_branch
      %15 = sbr.rel (0) target = $region9
    $region8: #{tpu_custom_call.1} parent=1 // pred_region
      _
    $region9: #{tpu_custom_call.1} parent=1 // pred_fallthru
      _
    // Predicated region
    $region10: #{tpu_custom_call.1} parent=1 // pred_check
      _
    $region11: #{tpu_custom_call.1} parent=1 // pred_check_branch
      %17 = sbr.rel (0) target = $region13
    $region12: #{tpu_custom_call.1} parent=1 // pred_region
      _
    $region13: #{tpu_custom_call.1} parent=1 // pred_fallthru
      _
    // Predicated region
    $region14: #{tpu_custom_call.1} parent=1 // pred_check
      _
    $region15: #{tpu_custom_call.1} parent=1 // pred_check_branch
      %19 = sbr.rel (0) target = $region17
    $region16: #{tpu_custom_call.1} parent=1 // pred_region
      _
    $region17: #{tpu_custom_call.1} parent=1 // pred_fallthru
      _
    // Predicated region
    $region18: #{tpu_custom_call.1} parent=1 // pred_check
      _
    $region19: #{tpu_custom_call.1} parent=1 // pred_check_branch
      %21 = sbr.rel (0) target = $region21
    $region20: #{tpu_custom_call.1} parent=1 // pred_region
      _
    $region21: #{tpu_custom_call.1} parent=1 // pred_fallthru
      _
    %p22 = scmp.eq.s32.totalorder 0, 0
    // Predicated region
    $region22: #{tpu_custom_call.1} parent=1 // pred_check
      %p23 = pneg %p22
    $region23: #{tpu_custom_call.1} parent=1 // pred_check_branch
      %25 = sbr.rel (%p23) target = $region25
    $region24: #{tpu_custom_call.1} parent=1 // pred_region
      %vm26 = vcmask 123904
      %27 = vst.msk [vmem:[#allocation2] sm:$0x3] %vm26, 0.0
    $region25: #{tpu_custom_call.1} parent=1 // pred_fallthru
      _
    %v28 = vld [vmem:[#allocation2] sm:$0x3]
    %v29 = vld [vmem:[%s0] sm:$0xff]
    %v30 = vld [vmem:[%s0 + $0x8] sm:$0xff]
    %v31 = vld [vmem:[%s0 + $0x10] sm:$0xff]
    %v32 = vld [vmem:[%s0 + $0x18] sm:$0xff]
    %vm33 = vcmask 130048
    %v34 = vsel %vm33, %v29, 0.0
    %35 = vadd.xlane.f32.xlu0 %v34
    %v36 = vpop.xlane.xlu0 %35
    %v37 = vsel %vm33, %v30, 0.0
    %38 = vadd.xlane.f32.xlu0 %v37
    %v39 = vpop.xlane.xlu0 %38
    %v40 = vsel %vm33, %v31, 0.0
    %41 = vadd.xlane.f32.xlu0 %v40
    %v42 = vpop.xlane.xlu0 %41
    %v43 = vsel %vm33, %v32, 0.0
    %44 = vadd.xlane.f32.xlu0 %v43
    %v45 = vpop.xlane.xlu0 %44
    %v50 = vlaneseq
    %v51 = vand.u32 %v50, 127
    %v52 = vlaneseq
    %v53 = vshrl.u32 %v52, 7
    %v54 = vsub.s32 %v51, %v53
    %v55 = vrot.slane %v36, %v54
    %v56 = vadd.s32 %v51, 4294967288
    %v57 = vlaneseq
    %v58 = vshrl.u32 %v57, 7
    %v59 = vsub.s32 %v56, %v58
    %v60 = vrot.slane %v39, %v59
    %vm61 = vcmask 130112
    %v62 = vsel %vm61, %v60, %v55
    %v63 = vlaneseq
    %v64 = vshrl.u32 %v63, 7
    %v65 = vsub.s32 %v51, %v64
    %v66 = vrot.slane %v42, %v65
    %v67 = vlaneseq
    %v68 = vshrl.u32 %v67, 7
    %v69 = vsub.s32 %v56, %v68
    %v70 = vrot.slane %v45, %v69
    %v71 = vsel %vm61, %v70, %v66
    %vm72 = vcmask 1041409
    %v73 = vsel %vm72, %v71, %v62
    %v75 = vadd.f32 %v28, %v73
    %vm76 = vcmask 123904
    %77 = vst.msk [vmem:[#allocation2] sm:$0x3] %vm76, %v75
    // Predicated region
    $region26: #{tpu_custom_call.1} parent=1 // pred_check
      %p78 = pneg %p22
    $region27: #{tpu_custom_call.1} parent=1 // pred_check_branch
      %80 = sbr.rel (%p78) target = $region29
    $region28: #{tpu_custom_call.1} parent=1 // pred_region
      %v81 = vld [vmem:[#allocation2] sm:$0x3]
      %v82 = vld [vmem:[%s1] sm:$0xff]
      %v83 = vld [vmem:[%s1 + $0x8] sm:$0xff]
      %v85 = vsel %vm33, %v81, 0
      %87 = vmatprep.subr.mxu0 0.0
      %88 = vmatpush1.msra.mxu0 0.0
      %89 = vmatprep.subr.mxu0 0.0
      %90 = vmatpush1.msra.mxu0 0.0
      %91 = vmatprep.subr.mxu0 0.0
      %92 = vmatpush1.msra.mxu0 0.0
      %93 = vmatprep.subr.mxu0 0.0
      %94 = vmatpush1.msra.mxu0 0.0
      %95 = vmatprep.subr.mxu0 0.0
      %96 = vmatpush1.msra.mxu0 0.0
      %97 = vmatprep.subr.mxu0 0.0
      %98 = vmatpush1.msra.mxu0 0.0
      %99 = vmatprep.subr.mxu0 0.0
      %100 = vmatpush1.msra.mxu0 0.0
      %101 = vmatprep.subr.mxu0 0.0
      %102 = vmatpush1.msra.mxu0 0.0
      %103 = vmatprep.subr.mxu0 0.0
      %104 = vmatpush1.msra.mxu0 0.0
      %105 = vmatprep.subr.mxu0 0.0
      %106 = vmatpush1.msra.mxu0 0.0
      %107 = vmatprep.subr.mxu0 0.0
      %108 = vmatpush1.msra.mxu0 0.0
      %109 = vmatprep.subr.mxu0 0.0
      %110 = vmatpush1.msra.mxu0 0.0
      %111 = vmatprep.subr.mxu0 0.0
      %112 = vmatpush1.msra.mxu0 0.0
      %113 = vmatprep.subr.mxu0 0.0
      %114 = vmatpush1.msra.mxu0 0.0
      %115 = vmatprep.subr.mxu0 0.0
      %116 = vmatpush1.msra.mxu0 %v83
      %117 = vmatprep.subr.mxu0 0.0
      %118 = vmatpush1.msra.mxu0 %v82
      %119 = vmatprep.subr.mxu0 0.0
      %120 = vmatpush2.msra.mxu0 0.0
      %121 = vmatprep.subr.mxu0 0.0
      %122 = vmatpush2.msra.mxu0 0.0
      %123 = vmatprep.subr.mxu0 0.0
      %124 = vmatpush2.msra.mxu0 0.0
      %125 = vmatprep.subr.mxu0 0.0
      %126 = vmatpush2.msra.mxu0 0.0
      %127 = vmatprep.subr.mxu0 0.0
      %128 = vmatpush2.msra.mxu0 0.0
      %129 = vmatprep.subr.mxu0 0.0
      %130 = vmatpush2.msra.mxu0 0.0
      %131 = vmatprep.subr.mxu0 0.0
      %132 = vmatpush2.msra.mxu0 0.0
      %133 = vmatprep.subr.mxu0 0.0
      %134 = vmatpush2.msra.mxu0 0.0
      %135 = vmatprep.subr.mxu0 0.0
      %136 = vmatpush2.msra.mxu0 0.0
      %137 = vmatprep.subr.mxu0 0.0
      %138 = vmatpush2.msra.mxu0 0.0
      %139 = vmatprep.subr.mxu0 0.0
      %140 = vmatpush2.msra.mxu0 0.0
      %141 = vmatprep.subr.mxu0 0.0
      %142 = vmatpush2.msra.mxu0 0.0
      %143 = vmatprep.subr.mxu0 0.0
      %144 = vmatpush2.msra.mxu0 0.0
      %145 = vmatprep.subr.mxu0 0.0
      %146 = vmatpush2.msra.mxu0 0.0
      %147 = vmatprep.subr.mxu0 0.0
      %148 = vmatpush2.msra.mxu0 0.0
      %149 = vmatprep.subr.mxu0 0.0
      %150 = vmatpush2.msra.mxu0 0.0
      %151 = vmatprep.mubr.f32.mxu0 0.0
      %152 = vmatmul.mubr.f32.gmra.mxu0 %v85
      %v153 = vpop.f32.mrf.mxu0
      %v154 = vadd.f32 0.0, %v153
      %v155 = vpop.f32.mrf.mxu0
      %156 = vdwg.mxu0
      %v157 = vmax.f32 %v154, 0.0
      %v158 = vld [vmem:[%s2] sm:$0x1f]
      %v159 = vld [vmem:[%s3] sm:$0x1]
      %v161 = vlaneseq
      %v162 = vshrl.u32 %v161, 7
      %v163 = vsub.s32 0, %v162
      %v164 = vrot.slane %v159, %v163
      %vm166 = vcmask 39936
      %v168 = vsel %vm166, %v157, 0
      %vm170 = vcmask 1044480
      %v172 = vsel %vm170, %v158, 0
      %174 = vmatprep.subr.mxu0 0.0
      %175 = vmatpush1.msra.mxu0 0.0
      %176 = vmatprep.subr.mxu0 0.0
      %177 = vmatpush1.msra.mxu0 0.0
      %178 = vmatprep.subr.mxu0 0.0
      %179 = vmatpush1.msra.mxu0 0.0
      %180 = vmatprep.subr.mxu0 0.0
      %181 = vmatpush1.msra.mxu0 0.0
      %182 = vmatprep.subr.mxu0 0.0
      %183 = vmatpush1.msra.mxu0 0.0
      %184 = vmatprep.subr.mxu0 0.0
      %185 = vmatpush1.msra.mxu0 0.0
      %186 = vmatprep.subr.mxu0 0.0
      %187 = vmatpush1.msra.mxu0 0.0
      %188 = vmatprep.subr.mxu0 0.0
      %189 = vmatpush1.msra.mxu0 0.0
      %190 = vmatprep.subr.mxu0 0.0
      %191 = vmatpush1.msra.mxu0 0.0
      %192 = vmatprep.subr.mxu0 0.0
      %193 = vmatpush1.msra.mxu0 0.0
      %194 = vmatprep.subr.mxu0 0.0
      %195 = vmatpush1.msra.mxu0 0.0
      %196 = vmatprep.subr.mxu0 0.0
      %197 = vmatpush1.msra.mxu0 0.0
      %198 = vmatprep.subr.mxu0 0.0
      %199 = vmatpush1.msra.mxu0 0.0
      %200 = vmatprep.subr.mxu0 0.0
      %201 = vmatpush1.msra.mxu0 0.0
      %202 = vmatprep.subr.mxu0 0.0
      %203 = vmatpush1.msra.mxu0 0.0
      %204 = vmatprep.subr.mxu0 0.0
      %205 = vmatpush1.msra.mxu0 %v172
      %206 = vmatprep.subr.mxu0 0.0
      %207 = vmatpush2.msra.mxu0 0.0
      %208 = vmatprep.subr.mxu0 0.0
      %209 = vmatpush2.msra.mxu0 0.0
      %210 = vmatprep.subr.mxu0 0.0
      %211 = vmatpush2.msra.mxu0 0.0
      %212 = vmatprep.subr.mxu0 0.0
      %213 = vmatpush2.msra.mxu0 0.0
      %214 = vmatprep.subr.mxu0 0.0
      %215 = vmatpush2.msra.mxu0 0.0
      %216 = vmatprep.subr.mxu0 0.0
      %217 = vmatpush2.msra.mxu0 0.0
      %218 = vmatprep.subr.mxu0 0.0
      %219 = vmatpush2.msra.mxu0 0.0
      %220 = vmatprep.subr.mxu0 0.0
      %221 = vmatpush2.msra.mxu0 0.0
      %222 = vmatprep.subr.mxu0 0.0
      %223 = vmatpush2.msra.mxu0 0.0
      %224 = vmatprep.subr.mxu0 0.0
      %225 = vmatpush2.msra.mxu0 0.0
      %226 = vmatprep.subr.mxu0 0.0
      %227 = vmatpush2.msra.mxu0 0.0
      %228 = vmatprep.subr.mxu0 0.0
      %229 = vmatpush2.msra.mxu0 0.0
      %230 = vmatprep.subr.mxu0 0.0
      %231 = vmatpush2.msra.mxu0 0.0
      %232 = vmatprep.subr.mxu0 0.0
      %233 = vmatpush2.msra.mxu0 0.0
      %234 = vmatprep.subr.mxu0 0.0
      %235 = vmatpush2.msra.mxu0 0.0
      %236 = vmatprep.subr.mxu0 0.0
      %237 = vmatpush2.msra.mxu0 0.0
      %238 = vmatprep.mubr.f32.mxu0 0.0
      %239 = vmatmul.mubr.f32.gmra.mxu0 %v168
      %v240 = vpop.f32.mrf.mxu0
      %v241 = vadd.f32 %v164, %v240
      %v242 = vpop.f32.mrf.mxu0
      %243 = vdwg.mxu0
      %s244 = sld [smem:[#allocation3]]
      %v245 = vstv %s244
      %v246 = vrcp.pop %v245
      %s247 = vtos %v246
      %v248 = vstv %s247
      %v249 = vmul.f32 %v241, %v248
      %vm250 = vcmask 25600
      %v251 = vsel %vm250, %v249, -inf
      %252 = vmax.xlane.f32.xlu0 %v251
      %v253 = vpop.xlane.xlu0 %252
      %v254 = vsub.f32 %v249, %v253
      %v255 = vmul.f32 %v254, 1.442695
      %v256 = vpow.pop %v255
      %v257 = vsel %vm250, %v256, 0.0
      %258 = vadd.xlane.f32.xlu0 %v257
      %v259 = vpop.xlane.xlu0 %258
      %v260 = vrcp.pop %v259
      %v261 = vmul.f32 %v256, %v260
      %262 = vst.msk [vmem:[#allocation4] sm:$0x3] %vm250, %v261
    $region29: #{tpu_custom_call.1} parent=1 // pred_fallthru
      _
    // Predicated region
    $region30: #{tpu_custom_call.1} parent=1 // pred_check
      _
    $region31: #{tpu_custom_call.1} parent=1 // pred_check_branch
      %264 = sbr.rel (0) target = $region33
    $region32: #{tpu_custom_call.1} parent=1 // pred_region
      %s266 = ssub.s32 32, 32
      %267 = vsyncadd [#allocation5], %s266
      %s269 = sshll.u32 [#allocation4], 4
      %s270 = int_to_ptr.vmem [resolvable:$true] %s269
      %272 = dma.vmem_to_hbm [thread:$0]  %s270, 32, %s5, [#allocation5]
    $region33: #{tpu_custom_call.1} parent=1 // pred_fallthru
      _
    // Predicated region
    $region34: #{tpu_custom_call.1} parent=1 // pred_check
      _
    $region35: #{tpu_custom_call.1} parent=1 // pred_check_branch
      %274 = sbr.rel (0) target = $region37
    $region36: #{tpu_custom_call.1} parent=1 // pred_region
      %275 = dma.done [#allocation5], 32
    $region37: #{tpu_custom_call.1} parent=1 // pred_fallthru
      _
    %276 = vsyncpa [#allocation5], 1

</llo_original>
